<compile_context>
chip_gen: v5e
topology: v5e:2x2
jax: 0.10.0
libtpu: 0.0.40
codegen_flags: <defaults>
</compile_context>

<pallas_src>
import functools

import jax
import jax.numpy as jnp
from jax.experimental import pallas as pl
from jax.experimental.pallas import tpu as pltpu


def _round_up(x: int, m: int) -> int:
    return ((x + m - 1) // m) * m


def _accumulate_cols(x_ref, acc_ref, *, valid: int):
    """Add 128-lane chunks of the current tile into the lane-dense f32 acc.

    `valid` is the (static) number of in-range columns in this tile. Chunks
    that are entirely out of range are skipped at trace time; the single
    straddling chunk (if any) is masked with an iota compare.
    """
    tc = x_ref.shape[1]
    for start in range(0, tc, 128):
        if start >= valid:
            break
        chunk = x_ref[:, start:start + 128].astype(jnp.float32)
        if start + 128 > valid:
            lane = jax.lax.broadcasted_iota(jnp.int32, chunk.shape, 1)
            chunk = jnp.where(lane < (valid - start), chunk, 0.0)
        acc_ref[...] += chunk


def _mean_rows_kernel(x_ref, o_ref, acc_ref, *, inv_n, n_col_tiles, valid_last):
    # Grid = (row tiles, col tiles); col axis (axis 1) is the reduction axis.
    k = pl.program_id(1)

    @pl.when(k == 0)
    def _():
        acc_ref[...] = jnp.zeros_like(acc_ref)

    tc = x_ref.shape[1]
    if valid_last == tc:
        # cols divides evenly into tiles: every tile is mask-free.
        _accumulate_cols(x_ref, acc_ref, valid=tc)
    elif n_col_tiles == 1:
        # Single (ragged) column tile.
        _accumulate_cols(x_ref, acc_ref, valid=valid_last)
    else:
        # Hot path (all but the last column tile) stays mask-free.
        @pl.when(k < n_col_tiles - 1)
        def _():
            _accumulate_cols(x_ref, acc_ref, valid=tc)

        @pl.when(k == n_col_tiles - 1)
        def _():
            _accumulate_cols(x_ref, acc_ref, valid=valid_last)

    @pl.when(k == n_col_tiles - 1)
    def _():
        # Single cross-lane reduce per row tile; divide by the TRUE H*W.
        s = jnp.sum(acc_ref[...], axis=-1, keepdims=True)
        o_ref[...] = (s * inv_n).astype(o_ref.dtype)


def mean_dims_2_3(x, keepdim: bool = False, *,
                  col_tile_max: int = 2048,
                  buf_bytes: int = 4 * 1024 * 1024):
    """Mean over dims [2, 3] of an NCHW tensor, matching torch.mean(x, [2,3])."""
    # TODO(synk): arbitrary `dim` lists from the generic Mean module are not
    # handled here; this implements the NCHW dim=[2, 3] forward pass.
    n, c, h, w = x.shape
    rows, cols = n * c, h * w
    itemsize = jnp.dtype(x.dtype).itemsize

    # ---- column (reduction) tiling: lane extent a multiple of 128 ----------
    cols_128 = _round_up(cols, 128)
    n_ct = -(-cols_128 // col_tile_max)            # target number of col tiles
    tc = _round_up(-(-cols_128 // n_ct), 128)      # per-tile cols (mult of 128)
    grid_c = -(-cols // tc)                        # actual number of col tiles
    valid_last = cols - (grid_c - 1) * tc          # in-range lanes in last tile

    # ---- row tiling: sized purely from a per-buffer byte budget (2-4 MiB
    # blocks amortize the ~0.35 us per-grid-step overhead) -------------------
    sublane = max(8, 32 // itemsize)               # 8 (f32), 16 (bf16), 32 (i8)
    tr = max(sublane, (buf_bytes // (tc * itemsize)) // sublane * sublane)
    rows_su = _round_up(rows, sublane)
    tr = min(tr, rows_su)                          # don't over-tile tiny inputs
    if rows_su >= 2 * sublane:
        # Guarantee >=2 row tiles so the 'parallel' axis can shard across both
        # TensorCores on v7x (no-op cost on single-TC v5e/v6e).
        half = max(sublane, (rows_su // 2) // sublane * sublane)
        tr = min(tr, half)
    grid_r = -(-rows // tr)

    # ---- VMEM budget: 2x double-buffered input + lane-dense acc + output ---
    vmem_need = 2 * tr * tc * itemsize + tr * 128 * 4 + 2 * tr * itemsize
    vmem_limit = max(32 * 1024 * 1024,
                     min(int(vmem_need) + (8 << 20), 48 << 20))  # v7x-safe

    x2d = x.reshape(rows, cols)                    # no padding / HBM round trip

    kernel = functools.partial(_mean_rows_kernel,
                               inv_n=1.0 / float(cols),
                               n_col_tiles=grid_c,
                               valid_last=valid_last)

    out2d = pl.pallas_call(
        kernel,
        out_shape=jax.ShapeDtypeStruct((rows, 1), x.dtype),
        grid_spec=pltpu.PrefetchScalarGridSpec(
            num_scalar_prefetch=0,
            grid=(grid_r, grid_c),
            in_specs=[pl.BlockSpec((tr, tc), lambda i, k: (i, k))],
            out_specs=pl.BlockSpec((tr, 1), lambda i, k: (i, 0)),
            scratch_shapes=[pltpu.VMEM((tr, 128), jnp.float32)],
        ),
        compiler_params=pltpu.CompilerParams(
            # rows independent -> parallel (uses both TCs on v7x);
            # cols is the reduction -> arbitrary, and it is the last grid axis.
            dimension_semantics=("parallel", "arbitrary"),
            vmem_limit_bytes=vmem_limit,
        ),
        cost_estimate=pl.CostEstimate(
            flops=rows * cols,
            transcendentals=0,
            bytes_accessed=rows * cols * itemsize + rows * itemsize,
        ),
    )(x2d)

    if keepdim:
        return out2d.reshape(n, c, 1, 1)
    return out2d.reshape(n, c)


if __name__ == "__main__":
    key = jax.random.PRNGKey(0)
    k0, k1, k2 = jax.random.split(key, 3)

    # Shape implied by the module's typical use: NCHW, mean over H, W.
    x = jax.random.normal(k0, (2, 4, 16, 16), dtype=jnp.float32)
    out = jax.block_until_ready(mean_dims_2_3(x, keepdim=False))
    ref = jnp.mean(x, axis=(2, 3))
    assert out.shape == ref.shape, (out.shape, ref.shape)
    assert jnp.allclose(out, ref, atol=1e-5, rtol=1e-5)

    # Odd shape: ragged rows + ragged (masked) single column tile + keepdim.
    x2 = jax.random.normal(k1, (2, 6, 17, 19), dtype=jnp.float32)
    out2 = jax.block_until_ready(mean_dims_2_3(x2, keepdim=True))
    ref2 = jnp.mean(x2, axis=(2, 3), keepdims=True)
    assert out2.shape == ref2.shape, (out2.shape, ref2.shape)
    assert jnp.allclose(out2, ref2, atol=1e-5, rtol=1e-5)

    # H*W > col_tile_max: exercises multiple column tiles + masked last tile.
    x3 = jax.random.normal(k2, (2, 3, 48, 50), dtype=jnp.float32)
    out3 = jax.block_until_ready(mean_dims_2_3(x3, keepdim=False))
    ref3 = jnp.mean(x3, axis=(2, 3))
    assert out3.shape == ref3.shape, (out3.shape, ref3.shape)
    assert jnp.allclose(out3, ref3, atol=1e-5, rtol=1e-5)

    print("KERNEL_OK")
</pallas_src>

<mosaic_0001>
module attributes {stable_mosaic.version = 11 : i64} {
  func.func @_mean_rows_kernel(%arg0: i32, %arg1: i32, %arg2: memref<8x256xf32, #tpu.memory_space<vmem>>, %arg3: memref<8x1xf32, #tpu.memory_space<vmem>>, %arg4: memref<8x128xf32, #tpu.memory_space<vmem>>) attributes {dimension_semantics = [#tpu.dimension_semantics<parallel>, #tpu.dimension_semantics<arbitrary>], iteration_bounds = array<i64: 1, 1>, scalar_prefetch = 0 : i64, scratch_operands = 1 : i64, tpu.core_type = #tpu.core_type<tc>, window_params = [{transform_indices = @transform_0, window_bounds = array<i64: 8, 256>}, {transform_indices = @transform_1, window_bounds = array<i64: 8, 1>}]} {
    %c0_i32 = arith.constant 0 : i32
    %0 = arith.cmpi eq, %arg1, %c0_i32 : i32
    %1 = arith.extui %0 : i1 to i32
    %c0_i32_0 = arith.constant 0 : i32
    %2 = arith.cmpi ne, %1, %c0_i32_0 : i32
    scf.if %2 {
      %cst = arith.constant 0.000000e+00 : f32
      %14 = vector.broadcast %cst : f32 to vector<8x128xf32>
      %c0_13 = arith.constant 0 : index
      %c0_14 = arith.constant 0 : index
      %15 = vector.load %arg4[%c0_13, %c0_14] : memref<8x128xf32, #tpu.memory_space<vmem>>, vector<8x128xf32>
      tpu.vector_store %arg4[%c0_13, %c0_14], %14 {strides = array<i32>} : memref<8x128xf32, #tpu.memory_space<vmem>>, vector<8x128xf32>,
    } else {
    }
    %c0 = arith.constant 0 : index
    %c0_1 = arith.constant 0 : index
    %3 = vector.load %arg2[%c0, %c0_1] : memref<8x256xf32, #tpu.memory_space<vmem>>, vector<8x128xf32>
    %c0_2 = arith.constant 0 : index
    %c0_3 = arith.constant 0 : index
    %4 = vector.load %arg4[%c0_2, %c0_3] : memref<8x128xf32, #tpu.memory_space<vmem>>, vector<8x128xf32>
    %5 = arith.addf %4, %3 : vector<8x128xf32>
    %c0_4 = arith.constant 0 : index
    %c0_5 = arith.constant 0 : index
    %6 = vector.load %arg4[%c0_4, %c0_5] : memref<8x128xf32, #tpu.memory_space<vmem>>, vector<8x128xf32>
    tpu.vector_store %arg4[%c0_4, %c0_5], %5 {strides = array<i32>} : memref<8x128xf32, #tpu.memory_space<vmem>>, vector<8x128xf32>,
    %c0_6 = arith.constant 0 : index
    %c128 = arith.constant 128 : index
    %7 = vector.load %arg2[%c0_6, %c128] : memref<8x256xf32, #tpu.memory_space<vmem>>, vector<8x128xf32>
    %c0_7 = arith.constant 0 : index
    %c0_8 = arith.constant 0 : index
    %8 = vector.load %arg4[%c0_7, %c0_8] : memref<8x128xf32, #tpu.memory_space<vmem>>, vector<8x128xf32>
    %9 = arith.addf %8, %7 : vector<8x128xf32>
    %c0_9 = arith.constant 0 : index
    %c0_10 = arith.constant 0 : index
    %10 = vector.load %arg4[%c0_9, %c0_10] : memref<8x128xf32, #tpu.memory_space<vmem>>, vector<8x128xf32>
    tpu.vector_store %arg4[%c0_9, %c0_10], %9 {strides = array<i32>} : memref<8x128xf32, #tpu.memory_space<vmem>>, vector<8x128xf32>,
    %c0_i32_11 = arith.constant 0 : i32
    %11 = arith.cmpi eq, %arg1, %c0_i32_11 : i32
    %12 = arith.extui %11 : i1 to i32
    %c0_i32_12 = arith.constant 0 : i32
    %13 = arith.cmpi ne, %12, %c0_i32_12 : i32
    scf.if %13 {
      %c0_13 = arith.constant 0 : index
      %c0_14 = arith.constant 0 : index
      %14 = vector.load %arg4[%c0_13, %c0_14] : memref<8x128xf32, #tpu.memory_space<vmem>>, vector<8x128xf32>
      %cst = arith.constant dense<0.000000e+00> : vector<8xf32>
      %15 = vector.multi_reduction <add>, %14, %cst [1] : vector<8x128xf32> to vector<8xf32>
      %16 = vector.shape_cast %15 : vector<8xf32> to vector<8x1xf32>
      %cst_15 = arith.constant 3.906250e-03 : f32
      %17 = vector.broadcast %cst_15 : f32 to vector<8x1xf32>
      %18 = arith.mulf %16, %17 : vector<8x1xf32>
      %c0_16 = arith.constant 0 : index
      %c0_17 = arith.constant 0 : index
      %19 = vector.load %arg3[%c0_16, %c0_17] : memref<8x1xf32, #tpu.memory_space<vmem>>, vector<8x1xf32>
      tpu.vector_store %arg3[%c0_16, %c0_17], %18 {strides = array<i32>} : memref<8x1xf32, #tpu.memory_space<vmem>>, vector<8x1xf32>,
    } else {
    }
    return
  }
  func.func @transform_0(%arg0: i32, %arg1: i32) -> (i32, i32) {
    %c0_i32 = arith.constant 0 : i32
    return %arg0, %arg1 : i32, i32
  }
  func.func @transform_1(%arg0: i32, %arg1: i32) -> (i32, i32) {
    %c0_i32 = arith.constant 0 : i32
    %c0_i32_0 = arith.constant 0 : i32
    return %arg0, %c0_i32 : i32, i32
  }
}

</mosaic_0001>

<llo_original>
// kernel: tpu_custom_call.1
$region0: #{tpu_custom_call.1}
  #allocation0 [shape = 'u32[]', space=smem, size = 0x4, offset = 0x4, fixed_abs, tag = 'smem constant byte address 0x4 - core index']
  #allocation1 [shape = 'u32[72,128]{1,0:T(1,128)}', space=vmem, size = 0x9000, scoped, tag = 'internal scratch']
  #allocation2 [shape = 'f32[8,128]{1,0:T(8,128)}', space=vmem, size = 0x1000, scoped, tag = 'scratch operand']
  %s0 = inlined_call_operand.hbm [shape: f32[8,256], index: 0, kind: input, shape index: {}]
  %s1 = inlined_call_operand.vmem [shape: f32[8,1], index: 1, kind: output, shape index: {}]
  %s2 = sld [smem:[#allocation0]]
  $region26: #{tpu_custom_call.1} parent=0
    _
  %s4 = ssub.s32 1, %s2
  %s5 = scalar_select 0, %s4, %s2
  $region1: #{tpu_custom_call.1} parent=0
    #allocation3 [shape = 'u8[8192]{0}', space=vmem, size = 0x2000, scoped, tag = 'input window, operand 0, single buffered']
    #allocation4 [shape = 's32[1]{0}', space=sflag, size = 0x4, scoped, tag = 'scoped memory for tpu_custom_call.1']
    %6 = vsyncpa [#allocation4], 0
    // Predicated region
    $region2: #{tpu_custom_call.1} parent=1 // pred_check
      _
    $region3: #{tpu_custom_call.1} parent=1 // pred_check_branch
      %8 = sbr.rel (0) target = $region5
    $region4: #{tpu_custom_call.1} parent=1 // pred_region
      %10 = vsyncadd [#allocation4], 0
      %s12 = sshll.u32 %s0, 4
      %s13 = int_to_ptr.hbm [resolvable:$true] %s12
      %s14 = sshll.u32 [#allocation3], 4
      %s15 = int_to_ptr.vmem [resolvable:$true] %s14
      %17 = dma.hbm_to_vmem [thread:$0]  %s13, 256, %s15, [#allocation4]
    $region5: #{tpu_custom_call.1} parent=1 // pred_fallthru
      _
    // Predicated region
    $region6: #{tpu_custom_call.1} parent=1 // pred_check
      _
    $region7: #{tpu_custom_call.1} parent=1 // pred_check_branch
      %19 = sbr.rel (0) target = $region9
    $region8: #{tpu_custom_call.1} parent=1 // pred_region
      %21 = dma.done [#allocation4], 256
    $region9: #{tpu_custom_call.1} parent=1 // pred_fallthru
      _
    %p22 = scmp.eq.s32.totalorder 0, 0
    // Predicated region
    $region10: #{tpu_custom_call.1} parent=1 // pred_check
      %p23 = pneg %p22
    $region11: #{tpu_custom_call.1} parent=1 // pred_check_branch
      %25 = sbr.rel (%p23) target = $region13
    $region12: #{tpu_custom_call.1} parent=1 // pred_region
      %26 = vst [vmem:[#allocation2] sm:$0xff] 0.0
    $region13: #{tpu_custom_call.1} parent=1 // pred_fallthru
      _
    %v27 = vld [vmem:[#allocation3] sm:$0xff]
    %v28 = vld [vmem:[#allocation2] sm:$0xff]
    %v29 = vadd.f32 %v28, %v27
    %30 = vst [vmem:[#allocation2] sm:$0xff] %v29
    %v31 = vld [vmem:[#allocation3 + $0x8] sm:$0xff]
    %v32 = vld [vmem:[#allocation2] sm:$0xff]
    %v33 = vadd.f32 %v32, %v31
    %34 = vst [vmem:[#allocation2] sm:$0xff] %v33
    // Predicated region
    $region14: #{tpu_custom_call.1} parent=1 // pred_check
      %p35 = pneg %p22
    $region15: #{tpu_custom_call.1} parent=1 // pred_check_branch
      %37 = sbr.rel (%p35) target = $region17
    $region16: #{tpu_custom_call.1} parent=1 // pred_region
      %v38 = vld [vmem:[#allocation2] sm:$0xff]
      %39 = vadd.xlane.f32.xlu0 %v38
      %v40 = vpop.xlane.xlu0 %39
      %v41 = vmul.f32 %v40, 0.00390625
      %vm42 = vcmask 7168
      %43 = vst.msk [vmem:[%s1] sm:$0xff] %vm42, %v41
    $region17: #{tpu_custom_call.1} parent=1 // pred_fallthru
      _
    // Predicated region
    $region18: #{tpu_custom_call.1} parent=1 // pred_check
      _
    $region19: #{tpu_custom_call.1} parent=1 // pred_check_branch
      %45 = sbr.rel (0) target = $region21
    $region20: #{tpu_custom_call.1} parent=1 // pred_region
      _
    $region21: #{tpu_custom_call.1} parent=1 // pred_fallthru
      _
    // Predicated region
    $region22: #{tpu_custom_call.1} parent=1 // pred_check
      _
    $region23: #{tpu_custom_call.1} parent=1 // pred_check_branch
      %47 = sbr.rel (0) target = $region25
    $region24: #{tpu_custom_call.1} parent=1 // pred_region
      _
    $region25: #{tpu_custom_call.1} parent=1 // pred_fallthru
      _
    %48 = vsyncpa [#allocation4], 1

</llo_original>
